<compile_context>
chip_gen: v7x
topology: tpu7x:2x2x1
jax: 0.10.0
libtpu: 0.0.40
codegen_flags: <defaults>
</compile_context>

<pallas_src>
import functools
import re

import jax
import jax.numpy as jnp
import numpy as np
from jax.experimental import pallas as pl
from jax.experimental.pallas import tpu as pltpu


# --------------------------------------------------------------------------- #
# Kernel                                                                      #
# --------------------------------------------------------------------------- #
def _relation_attention_kernel(
    p_ref, x_ref, mbias_ref, wv_ref, bv_ref, vec_ref, scal_ref,
    out_ref, attn_ref,
):
    Bt, C, H = p_ref.shape
    L = x_ref.shape[1]

    p3 = p_ref[...]                                      # (Bt, C, H) f32
    x3 = x_ref[...]                                      # (Bt, L, H) f32

    # --- V projection: one (Bt*L, H) x (H, H) bf16 MXU matmul, f32 acc. ----
    x2 = x3.reshape(Bt * L, H).astype(jnp.bfloat16)
    v2 = jnp.dot(x2, wv_ref[...], preferred_element_type=jnp.float32)
    v3 = v2.reshape(Bt, L, H)                            # value bias deferred

    # --- folded rank-1 score / gate vectors (XLU reductions, no MXU). ------
    vec = vec_ref[...]                                   # (4, H) f32
    sq_v = vec[0:1, :].reshape(1, 1, H)                  # Wq^T @ ws[:H]
    sk_v = vec[1:2, :].reshape(1, 1, H)                  # Wk^T @ ws[H:]
    go_v = vec[2:3, :].reshape(1, 1, H)                  # wg[:H] (gate . out)
    gp_v = vec[3:4, :].reshape(1, 1, H)                  # wg[H:] (gate . p)
    score_bias = scal_ref[0]                             # SMEM scalar
    gate_bias = scal_ref[1]                              # SMEM scalar

    sq3 = jnp.sum(p3 * sq_v, axis=-1, keepdims=True)     # (Bt, C, 1)
    gp3 = jnp.sum(p3 * gp_v, axis=-1, keepdims=True)     # (Bt, C, 1)
    sk_bl = jnp.sum(x3 * sk_v, axis=-1)[:, None, :]      # (Bt, 1, L)

    # Mask is an additive bias on the key term: Bt*L adds instead of a
    # Bt*C*L select.  -1e9 absorbs O(1) logits in f32, so this matches
    # masked_fill(-1e9) + softmax exactly in practice.
    k_term = sk_bl + mbias_ref[...] + score_bias         # (Bt, 1, L)

    # score[b,c,l] = q_c.ws[:H] + k_l.ws[H:] + bs  (rank-1 separable fuse()).
    score = sq3 + k_term                                  # (Bt, C, L)
    score = score - jnp.max(score, axis=-1, keepdims=True)
    e = jnp.exp(score)
    denom = jnp.sum(e, axis=-1, keepdims=True)
    attn = e * pl.reciprocal(denom, approx=True)          # EUP slot: ~free

    # --- attention-weighted value sum. --------------------------------------
    if L <= 16:
        # Tiny L: unrolled VPU broadcast-MAC; the MXU would be <3% filled.
        ctx = attn[:, :, 0:1] * v3[:, 0:1, :]
        for l in range(1, L):
            ctx = ctx + attn[:, :, l:l + 1] * v3[:, l:l + 1, :]
    else:
        # Large L: bf16 x bf16 -> f32 batched MXU matmul (2x MXU rate).
        ctx = jnp.einsum(
            'bcl,bld->bcd',
            attn.astype(jnp.bfloat16), v3.astype(jnp.bfloat16),
            preferred_element_type=jnp.float32)

    # Deferred value bias (softmax rows sum ~1) + residual, then scalar gate.
    out = ctx + bv_ref[...].reshape(1, 1, H) + p3
    g = jax.nn.sigmoid(
        jnp.sum(out * go_v, axis=-1, keepdims=True) + gp3 + gate_bias)
    out_ref[...] = (g * out + (1.0 - g) * p3).astype(out_ref.dtype)
    attn_ref[...] = attn.astype(attn_ref.dtype)


# --------------------------------------------------------------------------- #
# Host-side configuration helpers                                             #
# --------------------------------------------------------------------------- #
def _tpu_generation():
    try:
        kind = jax.devices()[0].device_kind.lower()
    except Exception:
        return 6
    m = re.search(r"(\d+)", kind)
    return int(m.group(1)) if m else 6


def _hw_config(gen):
    if gen >= 7:   # v7x: 64 MiB VMEM/TC, 256x256 MXU, 2 TCs/chip
        return dict(mxu_rows=256, vmem_cap=48 * 2 ** 20,
                    block_cap=4 * 2 ** 20, need_two_steps=True)
    if gen == 6:   # v6e: 128 MiB VMEM, 256x256 MXU, 1 TC
        return dict(mxu_rows=256, vmem_cap=100 * 2 ** 20,
                    block_cap=20 * 2 ** 20, need_two_steps=False)
    if gen == 5:   # v5e/v5p: 128 MiB VMEM, 128x128 MXU, mem-bound
        return dict(mxu_rows=128, vmem_cap=100 * 2 ** 20,
                    block_cap=20 * 2 ** 20, need_two_steps=False)
    # older / unknown generations: stay conservative
    return dict(mxu_rows=128, vmem_cap=16 * 2 ** 20,
                block_cap=2 * 2 ** 20, need_two_steps=False)


def _pick_batch_block(B, C, L, H, *, mxu_rows, block_cap, need_two_steps):
    """Largest divisor of B sized for the matmuls actually emitted."""
    # The V projection has Bt*L rows, the ctx matmul C rows per batch:
    # target max(C, L) * Bt ~ MXU rows.
    rows_per_batch = max(C, L, 1)
    want = max(1, -(-mxu_rows // rows_per_batch))
    # one copy of every per-step block: p, x, mask bias, out (f32), attn (f32)
    per_batch_bytes = 4 * (2 * C * H + L * H + L + C * L)
    want = min(want, max(1, block_cap // max(1, per_batch_bytes)))
    if need_two_steps and B >= 2:
        want = min(want, B // 2)      # >=2 grid steps so both v7x TCs get work
    want = max(1, want)
    best = 1
    for d in range(1, B + 1):
        if B % d == 0 and d <= want:
            best = d
    return best


def _fold_params(params):
    """Fold the rank-1 score/gate Linears; bf16-cast the only real matmul W."""
    (wq_t, bq, wk_t, bk, wv_t, bv, ws, bs, wg, bg) = params
    H = wq_t.shape[0]
    ws = ws.astype(jnp.float32)
    wg = wg.astype(jnp.float32)
    # q, k exist only to feed score(cat([q, k])) -> collapse both projections.
    sq_vec = wq_t.astype(jnp.float32) @ ws[:H]                       # (H, 1)
    sk_vec = wk_t.astype(jnp.float32) @ ws[H:]                       # (H, 1)
    score_bias = (bq.astype(jnp.float32) @ ws[:H]
                  + bk.astype(jnp.float32) @ ws[H:]).reshape(()) + bs.reshape(())
    go_vec = wg[:H]                                                  # gate . out
    gp_vec = wg[H:]                                                  # gate . p
    gate_bias = bg.astype(jnp.float32).reshape(())
    vecs = jnp.concatenate([sq_vec, sk_vec, go_vec, gp_vec], axis=1).T   # (4, H)
    scalars = jnp.stack([score_bias, gate_bias]).astype(jnp.float32)     # (2,)
    return (wv_t.astype(jnp.bfloat16),
            bv.astype(jnp.float32).reshape(1, H),
            vecs.astype(jnp.float32),
            scalars)


# --------------------------------------------------------------------------- #
# pallas_call wrapper                                                         #
# --------------------------------------------------------------------------- #
@functools.partial(
    jax.jit,
    static_argnames=("Bt", "vmem_limit", "score_dtype", "single_buffer_weights"))
def _relation_attention_call(p, x, mask, params, *, Bt, vmem_limit,
                             score_dtype, single_buffer_weights):
    B, C, H = p.shape
    L = x.shape[1]
    wv_bf, bv2, vecs, scalars = _fold_params(params)
    p = p.astype(jnp.float32)
    x = x.astype(jnp.float32)
    # Mask -> additive bias on the key term (0 where kept, -1e9 where masked).
    mbias = ((mask.astype(jnp.float32) - 1.0) * 1e9).reshape(B, 1, L)

    grid = (B // Bt,)

    def const_spec(a):
        index_map = lambda b: (0,) * a.ndim
        if single_buffer_weights:
            try:   # single VMEM buffer for constant weights (matters on v7x)
                return pl.BlockSpec(a.shape, index_map,
                                    pipeline_mode=pl.Buffered(1))
            except Exception:   # older jax without pipeline_mode / Buffered
                pass
        return pl.BlockSpec(a.shape, index_map)

    in_specs = [
        pl.BlockSpec((Bt, C, H), lambda b: (b, 0, 0)),          # p
        pl.BlockSpec((Bt, L, H), lambda b: (b, 0, 0)),          # x
        pl.BlockSpec((Bt, 1, L), lambda b: (b, 0, 0)),          # mask bias
        const_spec(wv_bf),                                      # Wv^T (bf16)
        const_spec(bv2),                                        # bv
        const_spec(vecs),                                       # folded vectors
        pl.BlockSpec(memory_space=pltpu.MemorySpace.SMEM),      # scalar biases
    ]
    out_specs = (
        pl.BlockSpec((Bt, C, H), lambda b: (b, 0, 0)),
        pl.BlockSpec((Bt, C, L), lambda b: (b, 0, 0)),
    )
    out_shape = (
        jax.ShapeDtypeStruct((B, C, H), jnp.float32),
        jax.ShapeDtypeStruct((B, C, L), score_dtype),
    )

    cost = pl.CostEstimate(
        flops=2 * B * L * H * H + 2 * B * C * L * H
              + 6 * B * (C + L) * H + 4 * B * C * L,
        transcendentals=B * C * L + B * C,
        bytes_accessed=4 * (2 * B * C * H + B * L * H + B * L)
                       + B * C * L * jnp.dtype(score_dtype).itemsize
                       + 2 * H * H,
    )

    return pl.pallas_call(
        _relation_attention_kernel,
        out_shape=out_shape,
        grid=grid,
        in_specs=in_specs,
        out_specs=out_specs,
        compiler_params=pltpu.CompilerParams(
            dimension_semantics=("parallel",),
            vmem_limit_bytes=vmem_limit,
        ),
        cost_estimate=cost,
    )(p, x, mbias, wv_bf, bv2, vecs, scalars)


def relation_attention(p, x, mask, params, *, batch_block=None,
                       score_dtype=jnp.float32):
    """p: (B, C, H), x: (B, L, H), mask: (B, L) (1 = keep, 0 = mask out).

    score_dtype=jnp.bfloat16 halves attention-weight writeback (useful on
    mem-bound v5e); default f32 keeps the correctness check tight.
    """
    B, C, H = p.shape
    L = x.shape[1]
    if mask is None:
        mask = jnp.ones((B, L), jnp.float32)

    cfg = _hw_config(_tpu_generation())
    Bt = (batch_block if batch_block is not None else
          _pick_batch_block(B, C, L, H, mxu_rows=cfg["mxu_rows"],
                            block_cap=cfg["block_cap"],
                            need_two_steps=cfg["need_two_steps"]))
    if B % Bt != 0:
        raise ValueError(f"batch_block {Bt} must divide B={B}")

    # VMEM: double-buffered per-step blocks + weights + headroom, capped per gen.
    blk_bytes = 4 * (2 * Bt * C * H + Bt * L * H + Bt * L + Bt * C * L)
    wgt_bytes = 2 * H * H + 4 * (H + 4 * H + 2)
    need = 3 * blk_bytes + 2 * wgt_bytes + (4 << 20)
    vmem_limit = int(min(cfg["vmem_cap"], max(32 * 2 ** 20, need)))

    # Only force single-buffered constant weights when they are big enough
    # for double-buffering to matter (keeps the common/small case plain).
    single_buffer_weights = (2 * H * H) > (2 << 20)

    return _relation_attention_call(
        p, x, mask, params, Bt=Bt, vmem_limit=vmem_limit,
        score_dtype=score_dtype, single_buffer_weights=single_buffer_weights)


# --------------------------------------------------------------------------- #
# Parameters and reference                                                    #
# --------------------------------------------------------------------------- #
def init_params(key, hidden_size):
    """Deterministic synthetic parameters (shapes match the PyTorch module)."""
    H = hidden_size
    ks = jax.random.split(key, 10)
    s = 1.0 / np.sqrt(H)
    wq_t = jax.random.uniform(ks[0], (H, H), jnp.float32, -s, s)       # query.weight^T
    bq = jax.random.uniform(ks[1], (1, H), jnp.float32, -s, s)
    wk_t = jax.random.uniform(ks[2], (H, H), jnp.float32, -s, s)       # key.weight^T
    bk = jax.random.uniform(ks[3], (1, H), jnp.float32, -s, s)
    wv_t = jax.random.uniform(ks[4], (H, H), jnp.float32, -s, s)       # value.weight^T
    bv = jax.random.uniform(ks[5], (1, H), jnp.float32, -s, s)
    s2 = 1.0 / np.sqrt(2 * H)
    ws = jax.random.uniform(ks[6], (2 * H, 1), jnp.float32, -s2, s2)   # score.weight^T
    bs = jax.random.uniform(ks[7], (1, 1), jnp.float32, -s2, s2)
    wg = jax.random.uniform(ks[8], (2 * H, 1), jnp.float32, -s2, s2)   # gate.weight^T
    bg = jax.random.uniform(ks[9], (1, 1), jnp.float32, -s2, s2)
    return (wq_t, bq, wk_t, bk, wv_t, bv, ws, bs, wg, bg)


def reference_numpy(p, x, mask, params):
    """Original PyTorch module math, pure f32 (no bf16 mirroring)."""
    (wq_t, bq, wk_t, bk, wv_t, bv, ws, bs, wg, bg) = [
        np.asarray(a, np.float32) for a in params]
    p = np.asarray(p, np.float32)
    x = np.asarray(x, np.float32)
    mask = np.asarray(mask, np.float32)
    H = p.shape[-1]
    q = p @ wq_t + bq
    k = x @ wk_t + bk
    v = x @ wv_t + bv
    score = q @ ws[:H] + np.transpose(k @ ws[H:], (0, 2, 1)) + bs[0, 0]
    score = np.where(mask[:, None, :] < 0.5, np.float32(-1e9), score)
    score = score - score.max(-1, keepdims=True)
    e = np.exp(score)
    attn = e / e.sum(-1, keepdims=True)
    out = np.einsum('bcl,bld->bcd', attn, v) + p
    g = 1.0 / (1.0 + np.exp(-(out @ wg[:H] + p @ wg[H:] + bg[0, 0])))
    out = g * out + (1.0 - g) * p
    return out, attn


if __name__ == "__main__":
    B, C, L, H = 2, 8, 8, 32
    key = jax.random.PRNGKey(0)
    kp, kx, kparams = jax.random.split(key, 3)

    p = jax.random.normal(kp, (B, C, H), jnp.float32)
    x = jax.random.normal(kx, (B, L, H), jnp.float32)
    # valid-token mask: 1 = attend, 0 = mask out (last 2 positions of batch 1).
    mask = jnp.ones((B, L), jnp.float32).at[1, L - 2:].set(0.0)

    params = init_params(kparams, H)

    out, attn = relation_attention(p, x, mask, params)
    out = jax.block_until_ready(out)
    attn = jax.block_until_ready(attn)

    out_ref, attn_ref = reference_numpy(p, x, mask, params)
    # Tolerances cover the approx-reciprocal softmax normalization (~1e-3 rel)
    # and the bf16 V-projection matmul (~3e-3 abs) against the pure-f32
    # PyTorch-equivalent reference.
    np.testing.assert_allclose(np.asarray(attn), attn_ref, rtol=5e-3, atol=5e-3)
    np.testing.assert_allclose(np.asarray(out), out_ref, rtol=1e-2, atol=1e-2)

    print("KERNEL_OK")
</pallas_src>

<mosaic_0001>
module attributes {stable_mosaic.version = 11 : i64} {
  func.func @_relation_attention_kernel(%arg0: i32, %arg1: memref<2x8x32xf32, #tpu.memory_space<vmem>>, %arg2: memref<2x8x32xf32, #tpu.memory_space<vmem>>, %arg3: memref<2x1x8xf32, #tpu.memory_space<vmem>>, %arg4: memref<32x32xbf16, #tpu.memory_space<vmem>>, %arg5: memref<1x32xf32, #tpu.memory_space<vmem>>, %arg6: memref<4x32xf32, #tpu.memory_space<vmem>>, %arg7: memref<2xf32, #tpu.memory_space<smem>>, %arg8: memref<2x8x32xf32, #tpu.memory_space<vmem>>, %arg9: memref<2x8x8xf32, #tpu.memory_space<vmem>>) attributes {dimension_semantics = [#tpu.dimension_semantics<parallel>], iteration_bounds = array<i64: 1>, scalar_prefetch = 0 : i64, scratch_operands = 0 : i64, tpu.core_type = #tpu.core_type<tc>, window_params = [{transform_indices = @transform_0, window_bounds = array<i64: 2, 8, 32>}, {transform_indices = @transform_1, window_bounds = array<i64: 2, 8, 32>}, {transform_indices = @transform_2, window_bounds = array<i64: 2, 1, 8>}, {pipeline_mode = #tpu.pipeline_mode<synchronous>, transform_indices = @transform_3, window_bounds = array<i64: 32, 32>}, {pipeline_mode = #tpu.pipeline_mode<synchronous>, transform_indices = @transform_4, window_bounds = array<i64: 1, 32>}, {pipeline_mode = #tpu.pipeline_mode<synchronous>, transform_indices = @transform_5, window_bounds = array<i64: 4, 32>}, {transform_indices = @transform_6, window_bounds = array<i64: 2>}, {transform_indices = @transform_7, window_bounds = array<i64: 2, 8, 32>}, {transform_indices = @transform_8, window_bounds = array<i64: 2, 8, 8>}]} {
    %c0 = arith.constant 0 : index
    %c0_0 = arith.constant 0 : index
    %c0_1 = arith.constant 0 : index
    %0 = vector.load %arg1[%c0, %c0_0, %c0_1] : memref<2x8x32xf32, #tpu.memory_space<vmem>>, vector<2x8x32xf32>
    %c0_2 = arith.constant 0 : index
    %c0_3 = arith.constant 0 : index
    %c0_4 = arith.constant 0 : index
    %1 = vector.load %arg2[%c0_2, %c0_3, %c0_4] : memref<2x8x32xf32, #tpu.memory_space<vmem>>, vector<2x8x32xf32>
    %2 = vector.shape_cast %1 : vector<2x8x32xf32> to vector<16x32xf32>
    %3 = arith.truncf %2 : vector<16x32xf32> to vector<16x32xbf16>
    %c0_5 = arith.constant 0 : index
    %c0_6 = arith.constant 0 : index
    %4 = vector.load %arg4[%c0_5, %c0_6] : memref<32x32xbf16, #tpu.memory_space<vmem>>, vector<32x32xbf16>
    %cst = arith.constant dense<0.000000e+00> : vector<16x32xf32>
    %5 = tpu.matmul %3, %4, %cst {dimension_numbers = #tpu.dot_dimension_numbers<[1], [0], [0], [1], [0, 0, 1, 1], [], []>} : vector<16x32xbf16>, vector<32x32xbf16>, vector<16x32xf32> -> vector<16x32xf32>
    %6 = vector.shape_cast %5 : vector<16x32xf32> to vector<2x8x32xf32>
    %c0_7 = arith.constant 0 : index
    %c0_8 = arith.constant 0 : index
    %7 = vector.load %arg6[%c0_7, %c0_8] : memref<4x32xf32, #tpu.memory_space<vmem>>, vector<4x32xf32>
    %8 = vector.extract_strided_slice %7 {offsets = [0, 0], sizes = [1, 32], strides = [1, 1]} : vector<4x32xf32> to vector<1x32xf32>
    %9 = vector.shape_cast %8 : vector<1x32xf32> to vector<1x1x32xf32>
    %10 = vector.extract_strided_slice %7 {offsets = [1, 0], sizes = [1, 32], strides = [1, 1]} : vector<4x32xf32> to vector<1x32xf32>
    %11 = vector.shape_cast %10 : vector<1x32xf32> to vector<1x1x32xf32>
    %12 = vector.extract_strided_slice %7 {offsets = [2, 0], sizes = [1, 32], strides = [1, 1]} : vector<4x32xf32> to vector<1x32xf32>
    %13 = vector.shape_cast %12 : vector<1x32xf32> to vector<1x1x32xf32>
    %14 = vector.extract_strided_slice %7 {offsets = [3, 0], sizes = [1, 32], strides = [1, 1]} : vector<4x32xf32> to vector<1x32xf32>
    %15 = vector.shape_cast %14 : vector<1x32xf32> to vector<1x1x32xf32>
    %c0_9 = arith.constant 0 : index
    %16 = memref.load %arg7[%c0_9] : memref<2xf32, #tpu.memory_space<smem>>
    %c1 = arith.constant 1 : index
    %17 = memref.load %arg7[%c1] : memref<2xf32, #tpu.memory_space<smem>>
    %18 = vector.broadcast %9 : vector<1x1x32xf32> to vector<2x8x32xf32>
    %19 = arith.mulf %0, %18 : vector<2x8x32xf32>
    %cst_10 = arith.constant dense<0.000000e+00> : vector<2x8xf32>
    %20 = vector.multi_reduction <add>, %19, %cst_10 [2] : vector<2x8x32xf32> to vector<2x8xf32>
    %21 = vector.shape_cast %20 : vector<2x8xf32> to vector<2x8x1xf32>
    %22 = vector.broadcast %15 : vector<1x1x32xf32> to vector<2x8x32xf32>
    %23 = arith.mulf %0, %22 : vector<2x8x32xf32>
    %cst_11 = arith.constant dense<0.000000e+00> : vector<2x8xf32>
    %24 = vector.multi_reduction <add>, %23, %cst_11 [2] : vector<2x8x32xf32> to vector<2x8xf32>
    %25 = vector.shape_cast %24 : vector<2x8xf32> to vector<2x8x1xf32>
    %26 = vector.broadcast %11 : vector<1x1x32xf32> to vector<2x8x32xf32>
    %27 = arith.mulf %1, %26 : vector<2x8x32xf32>
    %cst_12 = arith.constant dense<0.000000e+00> : vector<2x8xf32>
    %28 = vector.multi_reduction <add>, %27, %cst_12 [2] : vector<2x8x32xf32> to vector<2x8xf32>
    %29 = vector.shape_cast %28 : vector<2x8xf32> to vector<2x1x8xf32>
    %c0_13 = arith.constant 0 : index
    %c0_14 = arith.constant 0 : index
    %c0_15 = arith.constant 0 : index
    %30 = vector.load %arg3[%c0_13, %c0_14, %c0_15] : memref<2x1x8xf32, #tpu.memory_space<vmem>>, vector<2x1x8xf32>
    %31 = arith.addf %29, %30 : vector<2x1x8xf32>
    %32 = vector.broadcast %16 : f32 to vector<2x1x8xf32>
    %33 = arith.addf %31, %32 : vector<2x1x8xf32>
    %34 = vector.broadcast %21 : vector<2x8x1xf32> to vector<2x8x8xf32>
    %35 = vector.broadcast %33 : vector<2x1x8xf32> to vector<2x8x8xf32>
    %36 = arith.addf %34, %35 : vector<2x8x8xf32>
    %cst_16 = arith.constant dense<0xFF800000> : vector<2x8xf32>
    %37 = vector.multi_reduction <maximumf>, %36, %cst_16 [2] : vector<2x8x8xf32> to vector<2x8xf32>
    %38 = vector.shape_cast %37 : vector<2x8xf32> to vector<2x8x1xf32>
    %39 = vector.broadcast %38 : vector<2x8x1xf32> to vector<2x8x8xf32>
    %40 = arith.subf %36, %39 : vector<2x8x8xf32>
    %41 = math.exp %40 : vector<2x8x8xf32>
    %cst_17 = arith.constant dense<0.000000e+00> : vector<2x8xf32>
    %42 = vector.multi_reduction <add>, %41, %cst_17 [2] : vector<2x8x8xf32> to vector<2x8xf32>
    %43 = vector.shape_cast %42 : vector<2x8xf32> to vector<2x8x1xf32>
    %44 = tpu.reciprocal %43 {approx = true} : vector<2x8x1xf32> -> vector<2x8x1xf32>
    %45 = vector.broadcast %44 : vector<2x8x1xf32> to vector<2x8x8xf32>
    %46 = arith.mulf %41, %45 : vector<2x8x8xf32>
    %47 = vector.extract_strided_slice %46 {offsets = [0, 0, 0], sizes = [2, 8, 1], strides = [1, 1, 1]} : vector<2x8x8xf32> to vector<2x8x1xf32>
    %48 = vector.extract_strided_slice %6 {offsets = [0, 0, 0], sizes = [2, 1, 32], strides = [1, 1, 1]} : vector<2x8x32xf32> to vector<2x1x32xf32>
    %49 = vector.broadcast %47 : vector<2x8x1xf32> to vector<2x8x32xf32>
    %50 = vector.broadcast %48 : vector<2x1x32xf32> to vector<2x8x32xf32>
    %51 = arith.mulf %49, %50 : vector<2x8x32xf32>
    %52 = vector.extract_strided_slice %46 {offsets = [0, 0, 1], sizes = [2, 8, 1], strides = [1, 1, 1]} : vector<2x8x8xf32> to vector<2x8x1xf32>
    %53 = vector.extract_strided_slice %6 {offsets = [0, 1, 0], sizes = [2, 1, 32], strides = [1, 1, 1]} : vector<2x8x32xf32> to vector<2x1x32xf32>
    %54 = vector.broadcast %52 : vector<2x8x1xf32> to vector<2x8x32xf32>
    %55 = vector.broadcast %53 : vector<2x1x32xf32> to vector<2x8x32xf32>
    %56 = arith.mulf %54, %55 : vector<2x8x32xf32>
    %57 = arith.addf %51, %56 : vector<2x8x32xf32>
    %58 = vector.extract_strided_slice %46 {offsets = [0, 0, 2], sizes = [2, 8, 1], strides = [1, 1, 1]} : vector<2x8x8xf32> to vector<2x8x1xf32>
    %59 = vector.extract_strided_slice %6 {offsets = [0, 2, 0], sizes = [2, 1, 32], strides = [1, 1, 1]} : vector<2x8x32xf32> to vector<2x1x32xf32>
    %60 = vector.broadcast %58 : vector<2x8x1xf32> to vector<2x8x32xf32>
    %61 = vector.broadcast %59 : vector<2x1x32xf32> to vector<2x8x32xf32>
    %62 = arith.mulf %60, %61 : vector<2x8x32xf32>
    %63 = arith.addf %57, %62 : vector<2x8x32xf32>
    %64 = vector.extract_strided_slice %46 {offsets = [0, 0, 3], sizes = [2, 8, 1], strides = [1, 1, 1]} : vector<2x8x8xf32> to vector<2x8x1xf32>
    %65 = vector.extract_strided_slice %6 {offsets = [0, 3, 0], sizes = [2, 1, 32], strides = [1, 1, 1]} : vector<2x8x32xf32> to vector<2x1x32xf32>
    %66 = vector.broadcast %64 : vector<2x8x1xf32> to vector<2x8x32xf32>
    %67 = vector.broadcast %65 : vector<2x1x32xf32> to vector<2x8x32xf32>
    %68 = arith.mulf %66, %67 : vector<2x8x32xf32>
    %69 = arith.addf %63, %68 : vector<2x8x32xf32>
    %70 = vector.extract_strided_slice %46 {offsets = [0, 0, 4], sizes = [2, 8, 1], strides = [1, 1, 1]} : vector<2x8x8xf32> to vector<2x8x1xf32>
    %71 = vector.extract_strided_slice %6 {offsets = [0, 4, 0], sizes = [2, 1, 32], strides = [1, 1, 1]} : vector<2x8x32xf32> to vector<2x1x32xf32>
    %72 = vector.broadcast %70 : vector<2x8x1xf32> to vector<2x8x32xf32>
    %73 = vector.broadcast %71 : vector<2x1x32xf32> to vector<2x8x32xf32>
    %74 = arith.mulf %72, %73 : vector<2x8x32xf32>
    %75 = arith.addf %69, %74 : vector<2x8x32xf32>
    %76 = vector.extract_strided_slice %46 {offsets = [0, 0, 5], sizes = [2, 8, 1], strides = [1, 1, 1]} : vector<2x8x8xf32> to vector<2x8x1xf32>
    %77 = vector.extract_strided_slice %6 {offsets = [0, 5, 0], sizes = [2, 1, 32], strides = [1, 1, 1]} : vector<2x8x32xf32> to vector<2x1x32xf32>
    %78 = vector.broadcast %76 : vector<2x8x1xf32> to vector<2x8x32xf32>
    %79 = vector.broadcast %77 : vector<2x1x32xf32> to vector<2x8x32xf32>
    %80 = arith.mulf %78, %79 : vector<2x8x32xf32>
    %81 = arith.addf %75, %80 : vector<2x8x32xf32>
    %82 = vector.extract_strided_slice %46 {offsets = [0, 0, 6], sizes = [2, 8, 1], strides = [1, 1, 1]} : vector<2x8x8xf32> to vector<2x8x1xf32>
    %83 = vector.extract_strided_slice %6 {offsets = [0, 6, 0], sizes = [2, 1, 32], strides = [1, 1, 1]} : vector<2x8x32xf32> to vector<2x1x32xf32>
    %84 = vector.broadcast %82 : vector<2x8x1xf32> to vector<2x8x32xf32>
    %85 = vector.broadcast %83 : vector<2x1x32xf32> to vector<2x8x32xf32>
    %86 = arith.mulf %84, %85 : vector<2x8x32xf32>
    %87 = arith.addf %81, %86 : vector<2x8x32xf32>
    %88 = vector.extract_strided_slice %46 {offsets = [0, 0, 7], sizes = [2, 8, 1], strides = [1, 1, 1]} : vector<2x8x8xf32> to vector<2x8x1xf32>
    %89 = vector.extract_strided_slice %6 {offsets = [0, 7, 0], sizes = [2, 1, 32], strides = [1, 1, 1]} : vector<2x8x32xf32> to vector<2x1x32xf32>
    %90 = vector.broadcast %88 : vector<2x8x1xf32> to vector<2x8x32xf32>
    %91 = vector.broadcast %89 : vector<2x1x32xf32> to vector<2x8x32xf32>
    %92 = arith.mulf %90, %91 : vector<2x8x32xf32>
    %93 = arith.addf %87, %92 : vector<2x8x32xf32>
    %c0_18 = arith.constant 0 : index
    %c0_19 = arith.constant 0 : index
    %94 = vector.load %arg5[%c0_18, %c0_19] : memref<1x32xf32, #tpu.memory_space<vmem>>, vector<1x32xf32>
    %95 = vector.shape_cast %94 : vector<1x32xf32> to vector<1x1x32xf32>
    %96 = vector.broadcast %95 : vector<1x1x32xf32> to vector<2x8x32xf32>
    %97 = arith.addf %93, %96 : vector<2x8x32xf32>
    %98 = arith.addf %97, %0 : vector<2x8x32xf32>
    %99 = vector.broadcast %13 : vector<1x1x32xf32> to vector<2x8x32xf32>
    %100 = arith.mulf %98, %99 : vector<2x8x32xf32>
    %cst_20 = arith.constant dense<0.000000e+00> : vector<2x8xf32>
    %101 = vector.multi_reduction <add>, %100, %cst_20 [2] : vector<2x8x32xf32> to vector<2x8xf32>
    %102 = vector.shape_cast %101 : vector<2x8xf32> to vector<2x8x1xf32>
    %103 = arith.addf %102, %25 : vector<2x8x1xf32>
    %104 = vector.broadcast %17 : f32 to vector<2x8x1xf32>
    %105 = arith.addf %103, %104 : vector<2x8x1xf32>
    %106 = arith.negf %105 : vector<2x8x1xf32>
    %107 = math.exp %106 : vector<2x8x1xf32>
    %cst_21 = arith.constant 1.000000e+00 : f32
    %108 = vector.broadcast %cst_21 : f32 to vector<2x8x1xf32>
    %109 = arith.addf %108, %107 : vector<2x8x1xf32>
    %110 = arith.divf %108, %109 : vector<2x8x1xf32>
    %111 = vector.broadcast %110 : vector<2x8x1xf32> to vector<2x8x32xf32>
    %112 = arith.mulf %111, %98 : vector<2x8x32xf32>
    %cst_22 = arith.constant 1.000000e+00 : f32
    %113 = vector.broadcast %cst_22 : f32 to vector<2x8x1xf32>
    %114 = arith.subf %113, %110 : vector<2x8x1xf32>
    %115 = vector.broadcast %114 : vector<2x8x1xf32> to vector<2x8x32xf32>
    %116 = arith.mulf %115, %0 : vector<2x8x32xf32>
    %117 = arith.addf %112, %116 : vector<2x8x32xf32>
    %c0_23 = arith.constant 0 : index
    %c0_24 = arith.constant 0 : index
    %c0_25 = arith.constant 0 : index
    %118 = vector.load %arg8[%c0_23, %c0_24, %c0_25] : memref<2x8x32xf32, #tpu.memory_space<vmem>>, vector<2x8x32xf32>
    tpu.vector_store %arg8[%c0_23, %c0_24, %c0_25], %117 {strides = array<i32>} : memref<2x8x32xf32, #tpu.memory_space<vmem>>, vector<2x8x32xf32>,
    %c0_26 = arith.constant 0 : index
    %c0_27 = arith.constant 0 : index
    %c0_28 = arith.constant 0 : index
    %119 = vector.load %arg9[%c0_26, %c0_27, %c0_28] : memref<2x8x8xf32, #tpu.memory_space<vmem>>, vector<2x8x8xf32>
    tpu.vector_store %arg9[%c0_26, %c0_27, %c0_28], %46 {strides = array<i32>} : memref<2x8x8xf32, #tpu.memory_space<vmem>>, vector<2x8x8xf32>,
    return
  }
  func.func @transform_0(%arg0: i32) -> (i32, i32, i32) {
    %c0_i32 = arith.constant 0 : i32
    %c0_i32_0 = arith.constant 0 : i32
    %c0_i32_1 = arith.constant 0 : i32
    return %arg0, %c0_i32, %c0_i32_0 : i32, i32, i32
  }
  func.func @transform_1(%arg0: i32) -> (i32, i32, i32) {
    %c0_i32 = arith.constant 0 : i32
    %c0_i32_0 = arith.constant 0 : i32
    %c0_i32_1 = arith.constant 0 : i32
    return %arg0, %c0_i32, %c0_i32_0 : i32, i32, i32
  }
  func.func @transform_2(%arg0: i32) -> (i32, i32, i32) {
    %c0_i32 = arith.constant 0 : i32
    %c0_i32_0 = arith.constant 0 : i32
    %c0_i32_1 = arith.constant 0 : i32
    return %arg0, %c0_i32, %c0_i32_0 : i32, i32, i32
  }
  func.func @transform_3(%arg0: i32) -> (i32, i32) {
    %c0_i32 = arith.constant 0 : i32
    %c0_i32_0 = arith.constant 0 : i32
    %c0_i32_1 = arith.constant 0 : i32
    return %c0_i32, %c0_i32_0 : i32, i32
  }
  func.func @transform_4(%arg0: i32) -> (i32, i32) {
    %c0_i32 = arith.constant 0 : i32
    %c0_i32_0 = arith.constant 0 : i32
    %c0_i32_1 = arith.constant 0 : i32
    return %c0_i32, %c0_i32_0 : i32, i32
  }
  func.func @transform_5(%arg0: i32) -> (i32, i32) {
    %c0_i32 = arith.constant 0 : i32
    %c0_i32_0 = arith.constant 0 : i32
    %c0_i32_1 = arith.constant 0 : i32
    return %c0_i32, %c0_i32_0 : i32, i32
  }
  func.func @transform_6(%arg0: i32) -> i32 {
    %c0_i32 = arith.constant 0 : i32
    %c0_i32_0 = arith.constant 0 : i32
    return %c0_i32 : i32
  }
  func.func @transform_7(%arg0: i32) -> (i32, i32, i32) {
    %c0_i32 = arith.constant 0 : i32
    %c0_i32_0 = arith.constant 0 : i32
    %c0_i32_1 = arith.constant 0 : i32
    return %arg0, %c0_i32, %c0_i32_0 : i32, i32, i32
  }
  func.func @transform_8(%arg0: i32) -> (i32, i32, i32) {
    %c0_i32 = arith.constant 0 : i32
    %c0_i32_0 = arith.constant 0 : i32
    %c0_i32_1 = arith.constant 0 : i32
    return %arg0, %c0_i32, %c0_i32_0 : i32, i32, i32
  }
}

</mosaic_0001>

<llo_original>
// kernel: _relation_attention_call.1
$region0: #{_relation_attention_call.1}
  #allocation0 [shape = 'u32[]', space=smem, size = 0x4, offset = 0x4, fixed_abs, tag = 'smem constant byte address 0x4 - core index']
  #allocation1 [shape = 'u32[144,128]{1,0:T(1,128)}', space=vmem, size = 0x12000, scoped, tag = 'internal scratch']
  %s0 = inlined_call_operand.vmem [shape: f32[2,8,32], index: 0, kind: input, shape index: {}]
  %s1 = inlined_call_operand.vmem [shape: f32[2,8,32], index: 1, kind: input, shape index: {}]
  %s2 = inlined_call_operand.vmem [shape: f32[2,1,8], index: 2, kind: input, shape index: {}]
  %s3 = inlined_call_operand.vmem [shape: bf16[32,32], index: 3, kind: input, shape index: {}]
  %s4 = inlined_call_operand.vmem [shape: f32[1,32], index: 4, kind: input, shape index: {}]
  %s5 = inlined_call_operand.vmem [shape: f32[4,32], index: 5, kind: input, shape index: {}]
  %s6 = inlined_call_operand.vmem [shape: f32[2], index: 6, kind: input, shape index: {}]
  %s7 = inlined_call_operand.hbm [shape: f32[2,8,32], index: 7, kind: output, shape index: {0}]
  %s8 = inlined_call_operand.hbm [shape: f32[2,8,8], index: 8, kind: output, shape index: {1}]
  %9 = xla_tuple %s7, %s8
  %s10 = sld [smem:[#allocation0]]
  $region50: #{_relation_attention_call.1} parent=0
    _
  %s12 = ssub.s32 1, %s10
  %s13 = scalar_select 0, %s12, %s10
  $region1: #{_relation_attention_call.1} parent=0
    #allocation2 [shape = 'u8[512]{0}', space=smem, size = 0x200, scoped, tag = 'input window, operand 6, single buffered']
    #allocation3 [shape = 's32[1]{0}', space=sflag, size = 0x4, scoped, tag = 'scoped memory for _relation_attention_call.1']
    #allocation4 [shape = 's32[1]{0}', space=sflag, size = 0x4, scoped, tag = 'scoped memory for _relation_attention_call.1']
    #allocation5 [shape = 'u8[8192]{0}', space=vmem, size = 0x2000, scoped, tag = 'output window, operand 0, single buffered']
    #allocation6 [shape = 'u8[8192]{0}', space=vmem, size = 0x2000, scoped, tag = 'output window, operand 1, single buffered']
    #allocation7 [shape = 's32[1]{0}', space=sflag, size = 0x4, scoped, tag = 'scoped memory for _relation_attention_call.1']
    %14 = vsyncpa [#allocation4], 0
    %15 = vsyncpa [#allocation3], 0
    %16 = vsyncpa [#allocation7], 0
    // Predicated region
    $region2: #{_relation_attention_call.1} parent=1 // pred_check
      _
    $region3: #{_relation_attention_call.1} parent=1 // pred_check_branch
      %18 = sbr.rel (0) target = $region5
    $region4: #{_relation_attention_call.1} parent=1 // pred_region
      _
    $region5: #{_relation_attention_call.1} parent=1 // pred_fallthru
      _
    // Predicated region
    $region6: #{_relation_attention_call.1} parent=1 // pred_check
      _
    $region7: #{_relation_attention_call.1} parent=1 // pred_check_branch
      %20 = sbr.rel (0) target = $region9
    $region8: #{_relation_attention_call.1} parent=1 // pred_region
      _
    $region9: #{_relation_attention_call.1} parent=1 // pred_fallthru
      _
    // Predicated region
    $region10: #{_relation_attention_call.1} parent=1 // pred_check
      _
    $region11: #{_relation_attention_call.1} parent=1 // pred_check_branch
      %22 = sbr.rel (0) target = $region13
    $region12: #{_relation_attention_call.1} parent=1 // pred_region
      _
    $region13: #{_relation_attention_call.1} parent=1 // pred_fallthru
      _
    // Predicated region
    $region14: #{_relation_attention_call.1} parent=1 // pred_check
      _
    $region15: #{_relation_attention_call.1} parent=1 // pred_check_branch
      %24 = sbr.rel (0) target = $region17
    $region16: #{_relation_attention_call.1} parent=1 // pred_region
      _
    $region17: #{_relation_attention_call.1} parent=1 // pred_fallthru
      _
    // Predicated region
    $region18: #{_relation_attention_call.1} parent=1 // pred_check
      _
    $region19: #{_relation_attention_call.1} parent=1 // pred_check_branch
      %26 = sbr.rel (0) target = $region21
    $region20: #{_relation_attention_call.1} parent=1 // pred_region
      _
    $region21: #{_relation_attention_call.1} parent=1 // pred_fallthru
      _
    // Predicated region
    $region22: #{_relation_attention_call.1} parent=1 // pred_check
      _
    $region23: #{_relation_attention_call.1} parent=1 // pred_check_branch
      %28 = sbr.rel (0) target = $region25
    $region24: #{_relation_attention_call.1} parent=1 // pred_region
      _
    $region25: #{_relation_attention_call.1} parent=1 // pred_fallthru
      _
    // Predicated region
    $region26: #{_relation_attention_call.1} parent=1 // pred_check
      _
    $region27: #{_relation_attention_call.1} parent=1 // pred_check_branch
      %30 = sbr.rel (0) target = $region29
    $region28: #{_relation_attention_call.1} parent=1 // pred_region
      %s32 = ssub.s32 16, 16
      %33 = vsyncadd [#allocation4], %s32
      %s35 = sshll.u32 %s6, 4
      %s36 = int_to_ptr.vmem [resolvable:$true] %s35
      %38 = dma.vmem_to_smem %s36, 16, [#allocation2], [#allocation4]
    $region29: #{_relation_attention_call.1} parent=1 // pred_fallthru
      _
    // Predicated region
    $region30: #{_relation_attention_call.1} parent=1 // pred_check
      _
    $region31: #{_relation_attention_call.1} parent=1 // pred_check_branch
      %40 = sbr.rel (0) target = $region33
    $region32: #{_relation_attention_call.1} parent=1 // pred_region
      %41 = dma.done [#allocation4], 16
    $region33: #{_relation_attention_call.1} parent=1 // pred_fallthru
      _
    %42 = sfence
    %v44 = vld [vmem:[%s0] sm:$0xff]
    %v45 = vld [vmem:[%s0 + $0x8] sm:$0xff]
    %v46 = vld [vmem:[%s1] sm:$0xff]
    %v47 = vld [vmem:[%s1 + $0x8] sm:$0xff]
    %v48 = vpack.c.bf16 %v47, %v46
    %v49 = vld [vmem:[%s3] sm:$0xf]
    %v50 = vld [vmem:[%s3 + $0x4] sm:$0xf]
    %v51 = vld [vmem:[%s3 + $0x8] sm:$0xf]
    %v52 = vld [vmem:[%s3 + $0xc] sm:$0xf]
    %v57 = vunpack.c.l.b16 %v49
    %v58 = vunpack.c.l.b16 %v50
    %v59 = vunpack.c.l.b16 %v51
    %v60 = vunpack.c.l.b16 %v52
    %v61 = vpack.c.b16 %v58, %v57
    %v62 = vpack.c.b16 %v60, %v59
    %vm65 = vcmask 261120
    %v67 = vsel %vm65, %v48, 0
    %69 = vmatprep.subr.bf16.mxu0 0
    %70 = vmatpush1.bf16.msra.mxu0 %v61
    %71 = vmatprep.subr.bf16.mxu0 0
    %72 = vmatpush1.bf16.msra.mxu0 %v62
    %73 = vmatprep.subr.bf16.mxu0 0
    %74 = vmatpush1.bf16.msra.mxu0 0
    %75 = vmatprep.subr.bf16.mxu0 0
    %76 = vmatpush1.bf16.msra.mxu0 0
    %77 = vmatprep.subr.bf16.mxu0 0
    %78 = vmatpush1.bf16.msra.mxu0 0
    %79 = vmatprep.subr.bf16.mxu0 0
    %80 = vmatpush1.bf16.msra.mxu0 0
    %81 = vmatprep.subr.bf16.mxu0 0
    %82 = vmatpush1.bf16.msra.mxu0 0
    %83 = vmatprep.subr.bf16.mxu0 0
    %84 = vmatpush1.bf16.msra.mxu0 0
    %85 = vmatprep.subr.bf16.mxu0 0
    %86 = vmatpush1.bf16.msra.mxu0 0
    %87 = vmatprep.subr.bf16.mxu0 0
    %88 = vmatpush1.bf16.msra.mxu0 0
    %89 = vmatprep.subr.bf16.mxu0 0
    %90 = vmatpush1.bf16.msra.mxu0 0
    %91 = vmatprep.subr.bf16.mxu0 0
    %92 = vmatpush1.bf16.msra.mxu0 0
    %93 = vmatprep.subr.bf16.mxu0 0
    %94 = vmatpush1.bf16.msra.mxu0 0
    %95 = vmatprep.subr.bf16.mxu0 0
    %96 = vmatpush1.bf16.msra.mxu0 0
    %97 = vmatprep.subr.bf16.mxu0 0
    %98 = vmatpush1.bf16.msra.mxu0 0
    %99 = vmatprep.subr.bf16.mxu0 0
    %100 = vmatpush1.bf16.msra.mxu0 0
    %101 = vmatprep.mubr.bf16.mxu0 0
    %102 = vmatmul.mubr.bf16.gmra.mrb[0].mxu0 %v67
    %v103 = vpop.f32.mrb[0].mxu0
    %v104 = vadd.f32 0.0, %v103
    %v105 = vpop.f32.mrb[0].mxu0
    %v106 = vpop.f32.mrb[0].mxu0
    %v107 = vadd.f32 0.0, %v106
    %v108 = vpop.f32.mrb[0].mxu0
    %109 = vdwg.mxu0
    %v110 = vld [vmem:[%s5] sm:$0xf]
    %s111 = sld [smem:[#allocation2]]
    %s112 = sld [smem:[#allocation2 + $0x1]]
    %v113 = vlaneseq
    %v114 = vshrl.u32 %v113, 7
    %v115 = vsub.s32 0, %v114
    %v116 = vrot.slane %v110, %v115
    %v117 = vmul.f32 %v44, %v116
    %v118 = vmul.f32 %v45, %v116
    %v119 = vsel %vm65, %v117, 0.0
    %120 = vadd.xlane.f32.xlu0 %v119
    %v121 = vpop.xlane.xlu0 %120
    %v122 = vsel %vm65, %v118, 0.0
    %123 = vadd.xlane.f32.xlu0 %v122
    %v124 = vpop.xlane.xlu0 %123
    %v125 = vlaneseq
    %v126 = vshrl.u32 %v125, 7
    %v127 = vsub.s32 3, %v126
    %v128 = vrot.slane %v110, %v127
    %v129 = vmul.f32 %v44, %v128
    %v130 = vmul.f32 %v45, %v128
    %v131 = vsel %vm65, %v129, 0.0
    %132 = vadd.xlane.f32.xlu0 %v131
    %v133 = vpop.xlane.xlu0 %132
    %v134 = vsel %vm65, %v130, 0.0
    %135 = vadd.xlane.f32.xlu0 %v134
    %v136 = vpop.xlane.xlu0 %135
    %v137 = vlaneseq
    %v138 = vshrl.u32 %v137, 7
    %v139 = vsub.s32 1, %v138
    %v140 = vrot.slane %v110, %v139
    %v141 = vmul.f32 %v46, %v140
    %v142 = vmul.f32 %v47, %v140
    %v143 = vsel %vm65, %v141, 0.0
    %144 = vadd.xlane.f32.xlu0 %v143
    %v145 = vpop.xlane.xlu0 %144
    %v146 = vsel %vm65, %v142, 0.0
    %147 = vadd.xlane.f32.xlu0 %v146
    %v148 = vpop.xlane.xlu0 %147
    %v149 = vld [vmem:[%s2] sm:$0x1]
    %v150 = vld [vmem:[%s2 + $0x1] sm:$0x1]
    %v153 = vlaneseq
    %v154 = vshrl.u32 %v153, 7
    %v155 = vsub.s32 0, %v154
    %v156 = vrot.slane %v149, %v155
    %v157 = vlaneseq
    %v158 = vshrl.u32 %v157, 7
    %v159 = vsub.s32 0, %v158
    %v160 = vrot.slane %v150, %v159
    %162 = vbcast.lane.b32.xlu0 %v156, 256
    %v163 = vpop.permute.xlu0 %162
    %165 = vbcast.lane.b32.xlu0 %v160, 256
    %v166 = vpop.permute.xlu0 %165
    %v169 = vadd.f32 %v145, %v163
    %v170 = vadd.f32 %v148, %v166
    %v171 = vstv %s111
    %v172 = vadd.f32 %v169, %v171
    %v173 = vadd.f32 %v170, %v171
    %176 = vset.pattern.permute.xlu0 0
    %177 = vperm.xlu0 %176, %v172
    %v178 = vpop.permute.xlu0 %177
    %179 = vset.pattern.permute.xlu0 0
    %180 = vperm.xlu0 %179, %v173
    %v181 = vpop.permute.xlu0 %180
    %v182 = vlaneseq
    %v183 = vand.u32 %v182, 127
    %v184 = vlaneseq
    %v185 = vshrl.u32 %v184, 7
    %v186 = vsub.s32 %v183, %v185
    %v187 = vrot.slane %v178, %v186
    %v188 = vlaneseq
    %v189 = vshrl.u32 %v188, 7
    %v190 = vsub.s32 %v183, %v189
    %v191 = vrot.slane %v181, %v190
    %vm192 = vcmask 1042434
    %v193 = vsel %vm192, %v187, %v187
    %vm194 = vcmask 1043459
    %v195 = vsel %vm194, %v187, %v193
    %vm196 = vcmask 1044484
    %v197 = vsel %vm196, %v187, %v195
    %vm198 = vcmask 1045509
    %v199 = vsel %vm198, %v187, %v197
    %vm200 = vcmask 1046534
    %v201 = vsel %vm200, %v187, %v199
    %vm202 = vcmask 1047559
    %v203 = vsel %vm202, %v187, %v201
    %v204 = vsel %vm192, %v191, %v191
    %v205 = vsel %vm194, %v191, %v204
    %v206 = vsel %vm196, %v191, %v205
    %v207 = vsel %vm198, %v191, %v206
    %v208 = vsel %vm200, %v191, %v207
    %v209 = vsel %vm202, %v191, %v208
    %v212 = vadd.f32 %v121, %v203
    %v213 = vadd.f32 %v124, %v209
    %vm214 = vcmask 64512
    %v215 = vsel %vm214, %v212, -inf
    %216 = vmax.xlane.f32.xlu0 %v215
    %v217 = vpop.xlane.xlu0 %216
    %v218 = vsel %vm214, %v213, -inf
    %219 = vmax.xlane.f32.xlu0 %v218
    %v220 = vpop.xlane.xlu0 %219
    %v221 = vsub.f32 %v212, %v217
    %v222 = vsub.f32 %v213, %v220
    %v223 = vmul.f32 %v221, 1.442695
    %v224 = vpow.pop %v223
    %v225 = vmul.f32 %v222, 1.442695
    %v226 = vpow.pop %v225
    %v227 = vsel %vm214, %v224, 0.0
    %228 = vadd.xlane.f32.xlu0 %v227
    %v229 = vpop.xlane.xlu0 %228
    %v230 = vsel %vm214, %v226, 0.0
    %231 = vadd.xlane.f32.xlu0 %v230
    %v232 = vpop.xlane.xlu0 %231
    %v233 = vrcp.pop %v229
    %v234 = vrcp.pop %v232
    %v235 = vmul.f32 %v224, %v233
    %v236 = vmul.f32 %v226, %v234
    %238 = vset.pattern.permute.xlu0 0
    %239 = vperm.xlu0 %238, %v235
    %v240 = vpop.permute.xlu0 %239
    %243 = vset.pattern.permute.xlu0 0
    %244 = vperm.xlu0 %243, %v236
    %v245 = vpop.permute.xlu0 %244
    %v247 = vlaneseq
    %v248 = vshrl.u32 %v247, 7
    %v249 = vsub.s32 0, %v248
    %v250 = vrot.slane %v104, %v249
    %v251 = vlaneseq
    %v252 = vshrl.u32 %v251, 7
    %v253 = vsub.s32 0, %v252
    %v254 = vrot.slane %v107, %v253
    %v255 = vmul.f32 %v240, %v250
    %v256 = vmul.f32 %v245, %v254
    %257 = vset.pattern.permute.xlu0 1
    %258 = vperm.xlu0 %257, %v235
    %v259 = vpop.permute.xlu0 %258
    %261 = vset.pattern.permute.xlu0 1
    %262 = vperm.xlu0 %261, %v236
    %v263 = vpop.permute.xlu0 %262
    %v265 = vlaneseq
    %v266 = vshrl.u32 %v265, 7
    %v267 = vsub.s32 1, %v266
    %v268 = vrot.slane %v104, %v267
    %v269 = vlaneseq
    %v270 = vshrl.u32 %v269, 7
    %v271 = vsub.s32 1, %v270
    %v272 = vrot.slane %v107, %v271
    %v273 = vmul.f32 %v259, %v268
    %v274 = vmul.f32 %v263, %v272
    %v275 = vadd.f32 %v255, %v273
    %v276 = vadd.f32 %v256, %v274
    %277 = vset.pattern.permute.xlu0 2
    %278 = vperm.xlu0 %277, %v235
    %v279 = vpop.permute.xlu0 %278
    %281 = vset.pattern.permute.xlu0 2
    %282 = vperm.xlu0 %281, %v236
    %v283 = vpop.permute.xlu0 %282
    %v285 = vlaneseq
    %v286 = vshrl.u32 %v285, 7
    %v287 = vsub.s32 2, %v286
    %v288 = vrot.slane %v104, %v287
    %v289 = vlaneseq
    %v290 = vshrl.u32 %v289, 7
    %v291 = vsub.s32 2, %v290
    %v292 = vrot.slane %v107, %v291
    %v293 = vmul.f32 %v279, %v288
    %v294 = vmul.f32 %v283, %v292
    %v295 = vadd.f32 %v275, %v293
    %v296 = vadd.f32 %v276, %v294
    %297 = vset.pattern.permute.xlu0 3
    %298 = vperm.xlu0 %297, %v235
    %v299 = vpop.permute.xlu0 %298
    %301 = vset.pattern.permute.xlu0 3
    %302 = vperm.xlu0 %301, %v236
    %v303 = vpop.permute.xlu0 %302
    %v305 = vlaneseq
    %v306 = vshrl.u32 %v305, 7
    %v307 = vsub.s32 3, %v306
    %v308 = vrot.slane %v104, %v307
    %v309 = vlaneseq
    %v310 = vshrl.u32 %v309, 7
    %v311 = vsub.s32 3, %v310
    %v312 = vrot.slane %v107, %v311
    %v313 = vmul.f32 %v299, %v308
    %v314 = vmul.f32 %v303, %v312
    %v315 = vadd.f32 %v295, %v313
    %v316 = vadd.f32 %v296, %v314
    %317 = vset.pattern.permute.xlu0 4
    %318 = vperm.xlu0 %317, %v235
    %v319 = vpop.permute.xlu0 %318
    %321 = vset.pattern.permute.xlu0 4
    %322 = vperm.xlu0 %321, %v236
    %v323 = vpop.permute.xlu0 %322
    %v325 = vlaneseq
    %v326 = vshrl.u32 %v325, 7
    %v327 = vsub.s32 4, %v326
    %v328 = vrot.slane %v104, %v327
    %v329 = vlaneseq
    %v330 = vshrl.u32 %v329, 7
    %v331 = vsub.s32 4, %v330
    %v332 = vrot.slane %v107, %v331
    %v333 = vmul.f32 %v319, %v328
    %v334 = vmul.f32 %v323, %v332
    %v335 = vadd.f32 %v315, %v333
    %v336 = vadd.f32 %v316, %v334
    %337 = vset.pattern.permute.xlu0 5
    %338 = vperm.xlu0 %337, %v235
    %v339 = vpop.permute.xlu0 %338
    %341 = vset.pattern.permute.xlu0 5
    %342 = vperm.xlu0 %341, %v236
    %v343 = vpop.permute.xlu0 %342
    %v345 = vlaneseq
    %v346 = vshrl.u32 %v345, 7
    %v347 = vsub.s32 5, %v346
    %v348 = vrot.slane %v104, %v347
    %v349 = vlaneseq
    %v350 = vshrl.u32 %v349, 7
    %v351 = vsub.s32 5, %v350
    %v352 = vrot.slane %v107, %v351
    %v353 = vmul.f32 %v339, %v348
    %v354 = vmul.f32 %v343, %v352
    %v355 = vadd.f32 %v335, %v353
    %v356 = vadd.f32 %v336, %v354
    %357 = vset.pattern.permute.xlu0 6
    %358 = vperm.xlu0 %357, %v235
    %v359 = vpop.permute.xlu0 %358
    %361 = vset.pattern.permute.xlu0 6
    %362 = vperm.xlu0 %361, %v236
    %v363 = vpop.permute.xlu0 %362
    %v365 = vlaneseq
    %v366 = vshrl.u32 %v365, 7
    %v367 = vsub.s32 6, %v366
    %v368 = vrot.slane %v104, %v367
    %v369 = vlaneseq
    %v370 = vshrl.u32 %v369, 7
    %v371 = vsub.s32 6, %v370
    %v372 = vrot.slane %v107, %v371
    %v373 = vmul.f32 %v359, %v368
    %v374 = vmul.f32 %v363, %v372
    %v375 = vadd.f32 %v355, %v373
    %v376 = vadd.f32 %v356, %v374
    %377 = vset.pattern.permute.xlu0 7
    %378 = vperm.xlu0 %377, %v235
    %v379 = vpop.permute.xlu0 %378
    %381 = vset.pattern.permute.xlu0 7
    %382 = vperm.xlu0 %381, %v236
    %v383 = vpop.permute.xlu0 %382
    %v385 = vlaneseq
    %v386 = vshrl.u32 %v385, 7
    %v387 = vsub.s32 7, %v386
    %v388 = vrot.slane %v104, %v387
    %v389 = vlaneseq
    %v390 = vshrl.u32 %v389, 7
    %v391 = vsub.s32 7, %v390
    %v392 = vrot.slane %v107, %v391
    %v393 = vmul.f32 %v379, %v388
    %v394 = vmul.f32 %v383, %v392
    %v395 = vadd.f32 %v375, %v393
    %v396 = vadd.f32 %v376, %v394
    %v397 = vld [vmem:[%s4] sm:$0x1]
    %v399 = vlaneseq
    %v400 = vshrl.u32 %v399, 7
    %v401 = vsub.s32 0, %v400
    %v402 = vrot.slane %v397, %v401
    %v404 = vadd.f32 %v395, %v402
    %v405 = vadd.f32 %v396, %v402
    %v406 = vadd.f32 %v404, %v44
    %v407 = vadd.f32 %v405, %v45
    %v408 = vlaneseq
    %v409 = vshrl.u32 %v408, 7
    %v410 = vsub.s32 2, %v409
    %v411 = vrot.slane %v110, %v410
    %v412 = vmul.f32 %v406, %v411
    %v413 = vmul.f32 %v407, %v411
    %v414 = vsel %vm65, %v412, 0.0
    %415 = vadd.xlane.f32.xlu0 %v414
    %v416 = vpop.xlane.xlu0 %415
    %v417 = vsel %vm65, %v413, 0.0
    %418 = vadd.xlane.f32.xlu0 %v417
    %v419 = vpop.xlane.xlu0 %418
    %v420 = vadd.f32 %v416, %v133
    %v421 = vadd.f32 %v419, %v136
    %v422 = vstv %s112
    %v423 = vadd.f32 %v420, %v422
    %v424 = vadd.f32 %v421, %v422
    %v425 = vxor.u32 %v423, 2147483648
    %v426 = vxor.u32 %v424, 2147483648
    %v427 = vmul.f32 %v425, 1.442695
    %v428 = vpow.pop %v427
    %v429 = vmul.f32 %v426, 1.442695
    %v430 = vpow.pop %v429
    %v431 = vadd.f32 %v428, 1.0
    %v432 = vadd.f32 %v430, 1.0
    %v433 = vrcp.pop %v431
    %v434 = vmul.f32 1.0, %v433
    %v435 = vrcp.pop %v432
    %v436 = vmul.f32 1.0, %v435
    %v437 = vmul.f32 %v434, %v406
    %v438 = vmul.f32 %v436, %v407
    %v439 = vsub.f32 1.0, %v434
    %v440 = vsub.f32 1.0, %v436
    %v441 = vmul.f32 %v439, %v44
    %v442 = vmul.f32 %v440, %v45
    %v443 = vadd.f32 %v437, %v441
    %v444 = vadd.f32 %v438, %v442
    %445 = vst.msk [vmem:[#allocation5] sm:$0xff] %vm65, %v443
    %446 = vst.msk [vmem:[#allocation5 + $0x8] sm:$0xff] %vm65, %v444
    %447 = vst.msk [vmem:[#allocation6] sm:$0xff] %vm214, %v235
    %448 = vst.msk [vmem:[#allocation6 + $0x8] sm:$0xff] %vm214, %v236
    // Predicated region
    $region34: #{_relation_attention_call.1} parent=1 // pred_check
      _
    $region35: #{_relation_attention_call.1} parent=1 // pred_check_branch
      %450 = sbr.rel (0) target = $region37
    $region36: #{_relation_attention_call.1} parent=1 // pred_region
      %s452 = ssub.s32 256, 256
      %453 = vsyncadd [#allocation3], %s452
      %s454 = sshll.u32 [#allocation5], 4
      %s455 = int_to_ptr.vmem [resolvable:$true] %s454
      %460 = dma.vmem_to_hbm [thread:$0]  %s455, 256, %s7, [#allocation3], 128, 128, 8
    $region37: #{_relation_attention_call.1} parent=1 // pred_fallthru
      _
    // Predicated region
    $region38: #{_relation_attention_call.1} parent=1 // pred_check
      _
    $region39: #{_relation_attention_call.1} parent=1 // pred_check_branch
      %462 = sbr.rel (0) target = $region41
    $region40: #{_relation_attention_call.1} parent=1 // pred_region
      %s464 = ssub.s32 256, 256
      %465 = vsyncadd [#allocation7], %s464
      %s466 = sshll.u32 [#allocation6], 4
      %s467 = int_to_ptr.vmem [resolvable:$true] %s466
      %472 = dma.vmem_to_hbm [thread:$0]  %s467, 256, %s8, [#allocation7], 128, 128, 8
    $region41: #{_relation_attention_call.1} parent=1 // pred_fallthru
      _
    // Predicated region
    $region42: #{_relation_attention_call.1} parent=1 // pred_check
      _
    $region43: #{_relation_attention_call.1} parent=1 // pred_check_branch
      %474 = sbr.rel (0) target = $region45
    $region44: #{_relation_attention_call.1} parent=1 // pred_region
      %475 = dma.done [#allocation3], 256
    $region45: #{_relation_attention_call.1} parent=1 // pred_fallthru
      _
    // Predicated region
    $region46: #{_relation_attention_call.1} parent=1 // pred_check
      _
    $region47: #{_relation_attention_call.1} parent=1 // pred_check_branch
      %477 = sbr.rel (0) target = $region49
    $region48: #{_relation_attention_call.1} parent=1 // pred_region
      %478 = dma.done [#allocation7], 256
    $region49: #{_relation_attention_call.1} parent=1 // pred_fallthru
      _
    %479 = vsyncpa [#allocation3], 1
    %480 = vsyncpa [#allocation7], 1
    %481 = vsyncpa [#allocation4], 1

</llo_original>
